<compile_context>
chip_gen: v7x
topology: tpu7x:2x2x1
jax: 0.10.0
libtpu: 0.0.40
codegen_flags: <defaults>
</compile_context>

<pallas_src>
import jax
import jax.numpy as jnp
from jax.experimental import pallas as pl
from jax.experimental.pallas import tpu as pltpu


def _round_up(x, m):
    return (x + m - 1) // m * m


# ---------------------------------------------------------------------------
# Kernel 1: h2 = ELU(x @ W1 + b1) @ W2        (per node-row tile)
# ---------------------------------------------------------------------------
def fc1_elu_w2_kernel(x_ref, w1_ref, b1_ref, w2_ref, h2_ref):
    h = jnp.dot(x_ref[...], w1_ref[...],
                preferred_element_type=jnp.float32) + b1_ref[...]
    # ELU (alpha=1.0). exp argument clamped to <= 0 so the discarded branch of
    # the where never overflows for large positive h.
    h = jnp.where(h > 0.0, h, jnp.exp(jnp.minimum(h, 0.0)) - 1.0)
    h2 = jnp.dot(h.astype(jnp.bfloat16), w2_ref[...],
                 preferred_element_type=jnp.float32)
    h2_ref[...] = h2.astype(h2_ref.dtype)


# ---------------------------------------------------------------------------
# Kernel 2: y = ReLU(A_norm @ h2 + b2)
#   grid = (row tiles of A [parallel], reduction tiles over A's cols [arbitrary])
# ---------------------------------------------------------------------------
def gconv_relu_kernel(a_ref, h2_ref, b2_ref, o_ref, acc_ref):
    k = pl.program_id(1)

    @pl.when(k == 0)
    def _():
        acc_ref[...] = jnp.zeros_like(acc_ref)

    acc_ref[...] += jnp.dot(a_ref[...], h2_ref[...],
                            preferred_element_type=jnp.float32)

    @pl.when(k == pl.num_programs(1) - 1)
    def _():
        y = acc_ref[...] + b2_ref[...]
        y = jnp.maximum(y, 0.0)            # ReLU
        # dropout1: eval-mode dropout is the identity.
        o_ref[...] = y.astype(o_ref.dtype)


def lsn_forward(static_x, w1, b1, a_norm, w2, b2, *, block=256):
    """Forward pass of LSN_module.

    Shapes: static_x (N, F), w1 (F, H), b1 (H,), a_norm (N, N), w2 (H, H), b2 (H,).
    """
    N, F = static_x.shape
    H = w1.shape[1]

    # TPU-friendly padding: last dims multiples of 128 (lane-dense stores),
    # row / reduction dims multiples of the tile size.
    tile = min(block, _round_up(N, 128))
    Np = _round_up(N, tile)
    Fp = _round_up(F, 128)
    Hp = _round_up(H, 128)

    # bf16 operands for the MXU (f32 accumulation inside the kernels); biases f32.
    xp = jnp.zeros((Np, Fp), jnp.bfloat16).at[:N, :F].set(static_x.astype(jnp.bfloat16))
    w1p = jnp.zeros((Fp, Hp), jnp.bfloat16).at[:F, :H].set(w1.astype(jnp.bfloat16))
    b1p = jnp.zeros((1, Hp), jnp.float32).at[0, :H].set(b1.astype(jnp.float32))
    ap = jnp.zeros((Np, Np), jnp.bfloat16).at[:N, :N].set(a_norm.astype(jnp.bfloat16))
    w2p = jnp.zeros((Hp, Hp), jnp.bfloat16).at[:H, :H].set(w2.astype(jnp.float32).astype(jnp.bfloat16))
    b2p = jnp.zeros((1, Hp), jnp.float32).at[0, :H].set(b2.astype(jnp.float32))

    vmem_limit = 32 * 1024 * 1024  # safe on v5e/v6e (128 MiB) and v7x (64 MiB/TC)

    # --- Kernel 1: fc1 + ELU + W2 (hoisted out of the adjacency reduction) ---
    h2 = pl.pallas_call(
        fc1_elu_w2_kernel,
        grid=(Np // tile,),
        in_specs=[
            pl.BlockSpec((tile, Fp), lambda i: (i, 0)),   # x row tile
            pl.BlockSpec((Fp, Hp), lambda i: (0, 0)),     # W1 (resident)
            pl.BlockSpec((1, Hp), lambda i: (0, 0)),      # b1
            pl.BlockSpec((Hp, Hp), lambda i: (0, 0)),     # W2 (resident)
        ],
        out_specs=pl.BlockSpec((tile, Hp), lambda i: (i, 0)),
        out_shape=jax.ShapeDtypeStruct((Np, Hp), jnp.bfloat16),
        compiler_params=pltpu.CompilerParams(
            dimension_semantics=("parallel",),
            vmem_limit_bytes=vmem_limit),
        cost_estimate=pl.CostEstimate(
            flops=2 * Np * Fp * Hp + 2 * Np * Hp * Hp,
            transcendentals=Np * Hp,
            bytes_accessed=2 * (Np * Fp + Fp * Hp + Hp * Hp + Np * Hp) + 4 * Hp),
    )(xp, w1p, b1p, w2p)

    # --- Kernel 2: aggregation (A_norm @ h2 + b2) + ReLU ---
    out_p = pl.pallas_call(
        gconv_relu_kernel,
        grid=(Np // tile, Np // tile),
        in_specs=[
            pl.BlockSpec((tile, tile), lambda i, k: (i, k)),  # A row x k tile
            pl.BlockSpec((tile, Hp), lambda i, k: (k, 0)),    # h2 k tile
            pl.BlockSpec((1, Hp), lambda i, k: (0, 0)),       # b2
        ],
        out_specs=pl.BlockSpec((tile, Hp), lambda i, k: (i, 0)),
        out_shape=jax.ShapeDtypeStruct((Np, Hp), jnp.float32),
        scratch_shapes=[pltpu.VMEM((tile, Hp), jnp.float32)],
        compiler_params=pltpu.CompilerParams(
            dimension_semantics=("parallel", "arbitrary"),
            vmem_limit_bytes=vmem_limit),
        cost_estimate=pl.CostEstimate(
            flops=2 * Np * Np * Hp,
            transcendentals=0,
            bytes_accessed=2 * (Np * Np + Np * Hp) + 4 * (Np * Hp + Hp)),
    )(ap, h2, b2p)

    return out_p[:N, :H]


def normalized_adjacency(adj):
    """DGL GraphConv norm='both': D_dst^{-1/2} A D_src^{-1/2} (degrees clamped >= 1)."""
    deg_out = jnp.maximum(adj.sum(axis=0), 1.0)   # out-degree of source nodes
    deg_in = jnp.maximum(adj.sum(axis=1), 1.0)    # in-degree of destination nodes
    norm_src = jax.lax.rsqrt(deg_out)
    norm_dst = jax.lax.rsqrt(deg_in)
    return norm_dst[:, None] * adj * norm_src[None, :]


if __name__ == "__main__":
    # Small deterministic configuration consistent with the module:
    #   sta_fes = 16 (input features), sta_h1 = 32 (hidden), N = 8 graph nodes.
    N, sta_fes, sta_h1 = 8, 16, 32

    key = jax.random.PRNGKey(0)
    k_x, k_w1, k_b1, k_w2 = jax.random.split(key, 4)

    static_x = jax.random.normal(k_x, (N, sta_fes), dtype=jnp.float32)

    # fc1 = nn.Linear(sta_fes, sta_h1), stored transposed as (F, H) for x @ W.
    w1 = jax.random.normal(k_w1, (sta_fes, sta_h1), dtype=jnp.float32) * 0.1
    b1 = jax.random.normal(k_b1, (sta_h1,), dtype=jnp.float32) * 0.1

    # convS = dgl.nn.GraphConv(sta_h1, sta_h1): weight (H, H), bias zeros.
    w2 = jax.random.normal(k_w2, (sta_h1, sta_h1), dtype=jnp.float32) * 0.1
    b2 = jnp.zeros((sta_h1,), dtype=jnp.float32)

    # Deterministic graph: ring (both directions) + self-loops, symmetric.
    adj = jnp.zeros((N, N), dtype=jnp.float32)
    idx = jnp.arange(N)
    adj = adj.at[idx, idx].set(1.0)
    adj = adj.at[idx, (idx + 1) % N].set(1.0)
    adj = adj.at[(idx + 1) % N, idx].set(1.0)
    a_norm = normalized_adjacency(adj)

    out = lsn_forward(static_x, w1, b1, a_norm, w2, b2)
    out = jax.block_until_ready(out)

    # Pure-JAX f32 reference (same forward semantics, eval-mode dropout = id).
    h1_ref = static_x @ w1 + b1
    h1_ref = jnp.where(h1_ref > 0, h1_ref, jnp.exp(jnp.minimum(h1_ref, 0.0)) - 1.0)
    ref = jnp.maximum(a_norm @ h1_ref @ w2 + b2, 0.0)

    assert out.shape == (N, sta_h1) and out.dtype == jnp.float32
    assert bool(jnp.all(jnp.isfinite(out)))
    assert bool(jnp.allclose(out, ref, atol=3e-2, rtol=3e-2)), \
        float(jnp.max(jnp.abs(out - ref)))

    print("KERNEL_OK")
</pallas_src>

<mosaic_0001>
module attributes {stable_mosaic.version = 11 : i64} {
  func.func @fc1_elu_w2_kernel(%arg0: i32, %arg1: memref<128x128xbf16, #tpu.memory_space<vmem>>, %arg2: memref<128x128xbf16, #tpu.memory_space<vmem>>, %arg3: memref<1x128xf32, #tpu.memory_space<vmem>>, %arg4: memref<128x128xbf16, #tpu.memory_space<vmem>>, %arg5: memref<128x128xbf16, #tpu.memory_space<vmem>>) attributes {dimension_semantics = [#tpu.dimension_semantics<parallel>], iteration_bounds = array<i64: 1>, scalar_prefetch = 0 : i64, scratch_operands = 0 : i64, tpu.core_type = #tpu.core_type<tc>, window_params = [{transform_indices = @transform_0, window_bounds = array<i64: 128, 128>}, {pipeline_mode = #tpu.pipeline_mode<synchronous>, transform_indices = @transform_1, window_bounds = array<i64: 128, 128>}, {pipeline_mode = #tpu.pipeline_mode<synchronous>, transform_indices = @transform_2, window_bounds = array<i64: 1, 128>}, {pipeline_mode = #tpu.pipeline_mode<synchronous>, transform_indices = @transform_3, window_bounds = array<i64: 128, 128>}, {transform_indices = @transform_4, window_bounds = array<i64: 128, 128>}]} {
    %c0 = arith.constant 0 : index
    %c0_0 = arith.constant 0 : index
    %0 = vector.load %arg1[%c0, %c0_0] : memref<128x128xbf16, #tpu.memory_space<vmem>>, vector<128x128xbf16>
    %c0_1 = arith.constant 0 : index
    %c0_2 = arith.constant 0 : index
    %1 = vector.load %arg2[%c0_1, %c0_2] : memref<128x128xbf16, #tpu.memory_space<vmem>>, vector<128x128xbf16>
    %cst = arith.constant dense<0.000000e+00> : vector<128x128xf32>
    %2 = tpu.matmul %0, %1, %cst {dimension_numbers = #tpu.dot_dimension_numbers<[1], [0], [0], [1], [0, 0, 1, 1], [], []>} : vector<128x128xbf16>, vector<128x128xbf16>, vector<128x128xf32> -> vector<128x128xf32>
    %c0_3 = arith.constant 0 : index
    %c0_4 = arith.constant 0 : index
    %3 = vector.load %arg3[%c0_3, %c0_4] : memref<1x128xf32, #tpu.memory_space<vmem>>, vector<1x128xf32>
    %4 = vector.broadcast %3 : vector<1x128xf32> to vector<128x128xf32>
    %5 = arith.addf %2, %4 : vector<128x128xf32>
    %cst_5 = arith.constant 0.000000e+00 : f32
    %6 = vector.broadcast %cst_5 : f32 to vector<128x128xf32>
    %7 = arith.cmpf ogt, %5, %6 : vector<128x128xf32>
    %cst_6 = arith.constant 0.000000e+00 : f32
    %8 = vector.broadcast %cst_6 : f32 to vector<128x128xf32>
    %9 = arith.minimumf %5, %8 : vector<128x128xf32>
    %10 = math.exp %9 : vector<128x128xf32>
    %cst_7 = arith.constant 1.000000e+00 : f32
    %11 = vector.broadcast %cst_7 : f32 to vector<128x128xf32>
    %12 = arith.subf %10, %11 : vector<128x128xf32>
    %13 = arith.select %7, %5, %12 : vector<128x128xi1>, vector<128x128xf32>
    %14 = arith.truncf %13 : vector<128x128xf32> to vector<128x128xbf16>
    %c0_8 = arith.constant 0 : index
    %c0_9 = arith.constant 0 : index
    %15 = vector.load %arg4[%c0_8, %c0_9] : memref<128x128xbf16, #tpu.memory_space<vmem>>, vector<128x128xbf16>
    %cst_10 = arith.constant dense<0.000000e+00> : vector<128x128xf32>
    %16 = tpu.matmul %14, %15, %cst_10 {dimension_numbers = #tpu.dot_dimension_numbers<[1], [0], [0], [1], [0, 0, 1, 1], [], []>} : vector<128x128xbf16>, vector<128x128xbf16>, vector<128x128xf32> -> vector<128x128xf32>
    %17 = arith.truncf %16 : vector<128x128xf32> to vector<128x128xbf16>
    %c0_11 = arith.constant 0 : index
    %c0_12 = arith.constant 0 : index
    %18 = vector.load %arg5[%c0_11, %c0_12] : memref<128x128xbf16, #tpu.memory_space<vmem>>, vector<128x128xbf16>
    tpu.vector_store %arg5[%c0_11, %c0_12], %17 {strides = array<i32>} : memref<128x128xbf16, #tpu.memory_space<vmem>>, vector<128x128xbf16>,
    return
  }
  func.func @transform_0(%arg0: i32) -> (i32, i32) {
    %c0_i32 = arith.constant 0 : i32
    %c0_i32_0 = arith.constant 0 : i32
    return %arg0, %c0_i32 : i32, i32
  }
  func.func @transform_1(%arg0: i32) -> (i32, i32) {
    %c0_i32 = arith.constant 0 : i32
    %c0_i32_0 = arith.constant 0 : i32
    %c0_i32_1 = arith.constant 0 : i32
    return %c0_i32, %c0_i32_0 : i32, i32
  }
  func.func @transform_2(%arg0: i32) -> (i32, i32) {
    %c0_i32 = arith.constant 0 : i32
    %c0_i32_0 = arith.constant 0 : i32
    %c0_i32_1 = arith.constant 0 : i32
    return %c0_i32, %c0_i32_0 : i32, i32
  }
  func.func @transform_3(%arg0: i32) -> (i32, i32) {
    %c0_i32 = arith.constant 0 : i32
    %c0_i32_0 = arith.constant 0 : i32
    %c0_i32_1 = arith.constant 0 : i32
    return %c0_i32, %c0_i32_0 : i32, i32
  }
  func.func @transform_4(%arg0: i32) -> (i32, i32) {
    %c0_i32 = arith.constant 0 : i32
    %c0_i32_0 = arith.constant 0 : i32
    return %arg0, %c0_i32 : i32, i32
  }
}

</mosaic_0001>

<llo_original>
// kernel: tpu_custom_call.1
$region0: #{tpu_custom_call.1}
  #allocation0 [shape = 'u32[]', space=smem, size = 0x4, offset = 0x4, fixed_abs, tag = 'smem constant byte address 0x4 - core index']
  #allocation1 [shape = 'u32[144,128]{1,0:T(1,128)}', space=vmem, size = 0x12000, scoped, tag = 'internal scratch']
  %s0 = inlined_call_operand.hbm [shape: bf16[128,128], index: 0, kind: input, shape index: {}]
  %s1 = inlined_call_operand.hbm [shape: bf16[128,128], index: 1, kind: input, shape index: {}]
  %s2 = inlined_call_operand.vmem [shape: f32[1,128], index: 2, kind: input, shape index: {}]
  %s3 = inlined_call_operand.hbm [shape: bf16[128,128], index: 3, kind: input, shape index: {}]
  %s4 = inlined_call_operand.hbm [shape: bf16[128,128], index: 4, kind: output, shape index: {}]
  %s5 = sld [smem:[#allocation0]]
  $region38: #{tpu_custom_call.1} parent=0
    _
  %s7 = ssub.s32 1, %s5
  %s8 = scalar_select 0, %s7, %s5
  $region1: #{tpu_custom_call.1} parent=0
    #allocation2 [shape = 'u8[32768]{0}', space=vmem, size = 0x8000, scoped, tag = 'input window, operand 0, single buffered']
    #allocation3 [shape = 's32[1]{0}', space=sflag, size = 0x4, scoped, tag = 'scoped memory for tpu_custom_call.1']
    #allocation4 [shape = 's32[1]{0}', space=sflag, size = 0x4, scoped, tag = 'scoped memory for tpu_custom_call.1']
    #allocation5 [shape = 'u8[32768]{0}', space=vmem, size = 0x8000, scoped, tag = 'input window, operand 1, single buffered']
    #allocation6 [shape = 's32[1]{0}', space=sflag, size = 0x4, scoped, tag = 'scoped memory for tpu_custom_call.1']
    #allocation7 [shape = 'u8[32768]{0}', space=vmem, size = 0x8000, scoped, tag = 'input window, operand 3, single buffered']
    #allocation8 [shape = 'u8[32768]{0}', space=vmem, size = 0x8000, scoped, tag = 'output window, operand 0, single buffered']
    %9 = vsyncpa [#allocation3], 0
    %10 = vsyncpa [#allocation6], 0
    %11 = vsyncpa [#allocation4], 0
    // Predicated region
    $region2: #{tpu_custom_call.1} parent=1 // pred_check
      _
    $region3: #{tpu_custom_call.1} parent=1 // pred_check_branch
      %13 = sbr.rel (0) target = $region5
    $region4: #{tpu_custom_call.1} parent=1 // pred_region
      %s15 = ssub.s32 1024, 1024
      %16 = vsyncadd [#allocation3], %s15
      %s17 = sshll.u32 [#allocation2], 4
      %s18 = int_to_ptr.vmem [resolvable:$true] %s17
      %23 = dma.hbm_to_vmem [thread:$0]  %s0, 1024, %s18, [#allocation3], 64, 64, 4
    $region5: #{tpu_custom_call.1} parent=1 // pred_fallthru
      _
    // Predicated region
    $region6: #{tpu_custom_call.1} parent=1 // pred_check
      _
    $region7: #{tpu_custom_call.1} parent=1 // pred_check_branch
      %25 = sbr.rel (0) target = $region9
    $region8: #{tpu_custom_call.1} parent=1 // pred_region
      %s27 = ssub.s32 1024, 1024
      %28 = vsyncadd [#allocation6], %s27
      %s29 = sshll.u32 [#allocation5], 4
      %s30 = int_to_ptr.vmem [resolvable:$true] %s29
      %35 = dma.hbm_to_vmem [thread:$0]  %s1, 1024, %s30, [#allocation6], 64, 64, 4
    $region9: #{tpu_custom_call.1} parent=1 // pred_fallthru
      _
    // Predicated region
    $region10: #{tpu_custom_call.1} parent=1 // pred_check
      _
    $region11: #{tpu_custom_call.1} parent=1 // pred_check_branch
      %37 = sbr.rel (0) target = $region13
    $region12: #{tpu_custom_call.1} parent=1 // pred_region
      _
    $region13: #{tpu_custom_call.1} parent=1 // pred_fallthru
      _
    // Predicated region
    $region14: #{tpu_custom_call.1} parent=1 // pred_check
      _
    $region15: #{tpu_custom_call.1} parent=1 // pred_check_branch
      %39 = sbr.rel (0) target = $region17
    $region16: #{tpu_custom_call.1} parent=1 // pred_region
      %s41 = ssub.s32 1024, 1024
      %42 = vsyncadd [#allocation6], %s41
      %s43 = sshll.u32 [#allocation7], 4
      %s44 = int_to_ptr.vmem [resolvable:$true] %s43
      %49 = dma.hbm_to_vmem [thread:$0]  %s3, 1024, %s44, [#allocation6], 64, 64, 4
    $region17: #{tpu_custom_call.1} parent=1 // pred_fallthru
      _
    // Predicated region
    $region18: #{tpu_custom_call.1} parent=1 // pred_check
      _
    $region19: #{tpu_custom_call.1} parent=1 // pred_check_branch
      %51 = sbr.rel (0) target = $region21
    $region20: #{tpu_custom_call.1} parent=1 // pred_region
      %52 = dma.done [#allocation3], 1024
    $region21: #{tpu_custom_call.1} parent=1 // pred_fallthru
      _
    // Predicated region
    $region22: #{tpu_custom_call.1} parent=1 // pred_check
      _
    $region23: #{tpu_custom_call.1} parent=1 // pred_check_branch
      %54 = sbr.rel (0) target = $region25
    $region24: #{tpu_custom_call.1} parent=1 // pred_region
      %55 = dma.done [#allocation6], 1024
    $region25: #{tpu_custom_call.1} parent=1 // pred_fallthru
      _
    // Predicated region
    $region26: #{tpu_custom_call.1} parent=1 // pred_check
      _
    $region27: #{tpu_custom_call.1} parent=1 // pred_check_branch
      %57 = sbr.rel (0) target = $region29
    $region28: #{tpu_custom_call.1} parent=1 // pred_region
      %58 = dma.done [#allocation6], 1024
    $region29: #{tpu_custom_call.1} parent=1 // pred_fallthru
      _
    %v60 = vld [vmem:[#allocation2] sm:$0xf]
    %v61 = vld [vmem:[#allocation2 + $0x4] sm:$0xf]
    %v62 = vld [vmem:[#allocation2 + $0x8] sm:$0xf]
    %v63 = vld [vmem:[#allocation2 + $0xc] sm:$0xf]
    %v64 = vld [vmem:[#allocation2 + $0x10] sm:$0xf]
    %v65 = vld [vmem:[#allocation2 + $0x14] sm:$0xf]
    %v66 = vld [vmem:[#allocation2 + $0x18] sm:$0xf]
    %v67 = vld [vmem:[#allocation2 + $0x1c] sm:$0xf]
    %v68 = vld [vmem:[#allocation2 + $0x20] sm:$0xf]
    %v69 = vld [vmem:[#allocation2 + $0x24] sm:$0xf]
    %v70 = vld [vmem:[#allocation2 + $0x28] sm:$0xf]
    %v71 = vld [vmem:[#allocation2 + $0x2c] sm:$0xf]
    %v72 = vld [vmem:[#allocation2 + $0x30] sm:$0xf]
    %v73 = vld [vmem:[#allocation2 + $0x34] sm:$0xf]
    %v74 = vld [vmem:[#allocation2 + $0x38] sm:$0xf]
    %v75 = vld [vmem:[#allocation2 + $0x3c] sm:$0xf]
    %v76 = vld [vmem:[#allocation5] sm:$0xf]
    %v77 = vld [vmem:[#allocation5 + $0x4] sm:$0xf]
    %v78 = vld [vmem:[#allocation5 + $0x8] sm:$0xf]
    %v79 = vld [vmem:[#allocation5 + $0xc] sm:$0xf]
    %v80 = vld [vmem:[#allocation5 + $0x10] sm:$0xf]
    %v81 = vld [vmem:[#allocation5 + $0x14] sm:$0xf]
    %v82 = vld [vmem:[#allocation5 + $0x18] sm:$0xf]
    %v83 = vld [vmem:[#allocation5 + $0x1c] sm:$0xf]
    %v84 = vld [vmem:[#allocation5 + $0x20] sm:$0xf]
    %v85 = vld [vmem:[#allocation5 + $0x24] sm:$0xf]
    %v86 = vld [vmem:[#allocation5 + $0x28] sm:$0xf]
    %v87 = vld [vmem:[#allocation5 + $0x2c] sm:$0xf]
    %v88 = vld [vmem:[#allocation5 + $0x30] sm:$0xf]
    %v89 = vld [vmem:[#allocation5 + $0x34] sm:$0xf]
    %v90 = vld [vmem:[#allocation5 + $0x38] sm:$0xf]
    %v91 = vld [vmem:[#allocation5 + $0x3c] sm:$0xf]
    %v92 = vld [vmem:[%s2] sm:$0x1]
    %v94 = vlaneseq
    %v95 = vshrl.u32 %v94, 7
    %v96 = vsub.s32 0, %v95
    %v97 = vrot.slane %v92, %v96
    %v115 = vunpack.c.l.b16 %v60
    %v116 = vunpack.c.l.b16 %v61
    %v117 = vunpack.c.l.b16 %v62
    %v118 = vunpack.c.l.b16 %v63
    %v119 = vunpack.c.l.b16 %v64
    %v120 = vunpack.c.l.b16 %v65
    %v121 = vunpack.c.l.b16 %v66
    %v122 = vunpack.c.l.b16 %v67
    %v123 = vunpack.c.l.b16 %v68
    %v124 = vunpack.c.l.b16 %v69
    %v125 = vunpack.c.l.b16 %v70
    %v126 = vunpack.c.l.b16 %v71
    %v127 = vunpack.c.l.b16 %v72
    %v128 = vunpack.c.l.b16 %v73
    %v129 = vunpack.c.l.b16 %v74
    %v130 = vunpack.c.l.b16 %v75
    %v131 = vpack.c.b16 %v116, %v115
    %v132 = vpack.c.b16 %v118, %v117
    %v133 = vpack.c.b16 %v120, %v119
    %v134 = vpack.c.b16 %v122, %v121
    %v135 = vpack.c.b16 %v124, %v123
    %v136 = vpack.c.b16 %v126, %v125
    %v137 = vpack.c.b16 %v128, %v127
    %v138 = vpack.c.b16 %v130, %v129
    %v163 = vunpack.c.l.b16 %v76
    %v164 = vunpack.c.l.b16 %v77
    %v165 = vunpack.c.l.b16 %v78
    %v166 = vunpack.c.l.b16 %v79
    %v167 = vunpack.c.l.b16 %v80
    %v168 = vunpack.c.l.b16 %v81
    %v169 = vunpack.c.l.b16 %v82
    %v170 = vunpack.c.l.b16 %v83
    %v171 = vunpack.c.l.b16 %v84
    %v172 = vunpack.c.l.b16 %v85
    %v173 = vunpack.c.l.b16 %v86
    %v174 = vunpack.c.l.b16 %v87
    %v175 = vunpack.c.l.b16 %v88
    %v176 = vunpack.c.l.b16 %v89
    %v177 = vunpack.c.l.b16 %v90
    %v178 = vunpack.c.l.b16 %v91
    %v179 = vpack.c.b16 %v164, %v163
    %v180 = vpack.c.b16 %v166, %v165
    %v181 = vpack.c.b16 %v168, %v167
    %v182 = vpack.c.b16 %v170, %v169
    %v183 = vpack.c.b16 %v172, %v171
    %v184 = vpack.c.b16 %v174, %v173
    %v185 = vpack.c.b16 %v176, %v175
    %v186 = vpack.c.b16 %v178, %v177
    %195 = vmatprep.subr.bf16.mxu0 0
    %196 = vmatpush1.bf16.msra.mxu0 %v179
    %197 = vmatprep.subr.bf16.mxu0 0
    %198 = vmatpush1.bf16.msra.mxu0 %v180
    %199 = vmatprep.subr.bf16.mxu0 0
    %200 = vmatpush1.bf16.msra.mxu0 %v181
    %201 = vmatprep.subr.bf16.mxu0 0
    %202 = vmatpush1.bf16.msra.mxu0 %v182
    %203 = vmatprep.subr.bf16.mxu0 0
    %204 = vmatpush1.bf16.msra.mxu0 %v183
    %205 = vmatprep.subr.bf16.mxu0 0
    %206 = vmatpush1.bf16.msra.mxu0 %v184
    %207 = vmatprep.subr.bf16.mxu0 0
    %208 = vmatpush1.bf16.msra.mxu0 %v185
    %209 = vmatprep.subr.bf16.mxu0 0
    %210 = vmatpush1.bf16.msra.mxu0 %v186
    %211 = vmatprep.subr.bf16.mxu0 0
    %212 = vmatpush1.bf16.msra.mxu0 0
    %213 = vmatprep.subr.bf16.mxu0 0
    %214 = vmatpush1.bf16.msra.mxu0 0
    %215 = vmatprep.subr.bf16.mxu0 0
    %216 = vmatpush1.bf16.msra.mxu0 0
    %217 = vmatprep.subr.bf16.mxu0 0
    %218 = vmatpush1.bf16.msra.mxu0 0
    %219 = vmatprep.subr.bf16.mxu0 0
    %220 = vmatpush1.bf16.msra.mxu0 0
    %221 = vmatprep.subr.bf16.mxu0 0
    %222 = vmatpush1.bf16.msra.mxu0 0
    %223 = vmatprep.subr.bf16.mxu0 0
    %224 = vmatpush1.bf16.msra.mxu0 0
    %225 = vmatprep.subr.bf16.mxu0 0
    %226 = vmatpush1.bf16.msra.mxu0 0
    %227 = vmatprep.mubr.bf16.mxu0 0
    %228 = vmatmul.mubr.bf16.gmra.mrb[0].mxu0 %v131
    %v229 = vpop.f32.mrb[0].mxu0
    %v230 = vadd.f32 %v97, %v229
    %v231 = vpop.f32.mrb[0].mxu0
    %v232 = vpop.f32.mrb[0].mxu0
    %v233 = vadd.f32 %v97, %v232
    %v234 = vpop.f32.mrb[0].mxu0
    %235 = vmatprep.mubr.bf16.mxu0 0
    %236 = vmatmul.mubr.bf16.gmra.mrb[0].mxu0 %v132
    %v237 = vpop.f32.mrb[0].mxu0
    %v238 = vadd.f32 %v97, %v237
    %v239 = vpop.f32.mrb[0].mxu0
    %v240 = vpop.f32.mrb[0].mxu0
    %v241 = vadd.f32 %v97, %v240
    %v242 = vpop.f32.mrb[0].mxu0
    %243 = vmatprep.mubr.bf16.mxu0 0
    %244 = vmatmul.mubr.bf16.gmra.mrb[0].mxu0 %v133
    %v245 = vpop.f32.mrb[0].mxu0
    %v246 = vadd.f32 %v97, %v245
    %v247 = vpop.f32.mrb[0].mxu0
    %v248 = vpop.f32.mrb[0].mxu0
    %v249 = vadd.f32 %v97, %v248
    %v250 = vpop.f32.mrb[0].mxu0
    %251 = vmatprep.mubr.bf16.mxu0 0
    %252 = vmatmul.mubr.bf16.gmra.mrb[0].mxu0 %v134
    %v253 = vpop.f32.mrb[0].mxu0
    %v254 = vadd.f32 %v97, %v253
    %v255 = vpop.f32.mrb[0].mxu0
    %v256 = vpop.f32.mrb[0].mxu0
    %v257 = vadd.f32 %v97, %v256
    %v258 = vpop.f32.mrb[0].mxu0
    %259 = vmatprep.mubr.bf16.mxu0 0
    %260 = vmatmul.mubr.bf16.gmra.mrb[0].mxu0 %v135
    %v261 = vpop.f32.mrb[0].mxu0
    %v262 = vadd.f32 %v97, %v261
    %v263 = vpop.f32.mrb[0].mxu0
    %v264 = vpop.f32.mrb[0].mxu0
    %v265 = vadd.f32 %v97, %v264
    %v266 = vpop.f32.mrb[0].mxu0
    %267 = vmatprep.mubr.bf16.mxu0 0
    %268 = vmatmul.mubr.bf16.gmra.mrb[0].mxu0 %v136
    %v269 = vpop.f32.mrb[0].mxu0
    %v270 = vadd.f32 %v97, %v269
    %v271 = vpop.f32.mrb[0].mxu0
    %v272 = vpop.f32.mrb[0].mxu0
    %v273 = vadd.f32 %v97, %v272
    %v274 = vpop.f32.mrb[0].mxu0
    %275 = vmatprep.mubr.bf16.mxu0 0
    %276 = vmatmul.mubr.bf16.gmra.mrb[0].mxu0 %v137
    %v277 = vpop.f32.mrb[0].mxu0
    %v278 = vadd.f32 %v97, %v277
    %v279 = vpop.f32.mrb[0].mxu0
    %v280 = vpop.f32.mrb[0].mxu0
    %v281 = vadd.f32 %v97, %v280
    %v282 = vpop.f32.mrb[0].mxu0
    %283 = vmatprep.mubr.bf16.mxu0 0
    %284 = vmatmul.mubr.bf16.gmra.mrb[0].mxu0 %v138
    %v285 = vpop.f32.mrb[0].mxu0
    %v286 = vadd.f32 %v97, %v285
    %v287 = vpop.f32.mrb[0].mxu0
    %v288 = vpop.f32.mrb[0].mxu0
    %v289 = vadd.f32 %v97, %v288
    %v290 = vpop.f32.mrb[0].mxu0
    %291 = vdwg.mxu0
    %vm292 = vcmp.gt.f32.partialorder %v230, 0.0
    %vm293 = vcmp.gt.f32.partialorder %v233, 0.0
    %vm294 = vcmp.gt.f32.partialorder %v238, 0.0
    %vm295 = vcmp.gt.f32.partialorder %v241, 0.0
    %vm296 = vcmp.gt.f32.partialorder %v246, 0.0
    %vm297 = vcmp.gt.f32.partialorder %v249, 0.0
    %vm298 = vcmp.gt.f32.partialorder %v254, 0.0
    %vm299 = vcmp.gt.f32.partialorder %v257, 0.0
    %vm300 = vcmp.gt.f32.partialorder %v262, 0.0
    %vm301 = vcmp.gt.f32.partialorder %v265, 0.0
    %vm302 = vcmp.gt.f32.partialorder %v270, 0.0
    %vm303 = vcmp.gt.f32.partialorder %v273, 0.0
    %vm304 = vcmp.gt.f32.partialorder %v278, 0.0
    %vm305 = vcmp.gt.f32.partialorder %v281, 0.0
    %vm306 = vcmp.gt.f32.partialorder %v286, 0.0
    %vm307 = vcmp.gt.f32.partialorder %v289, 0.0
    %v308 = vmin.f32 %v230, 0.0
    %v309 = vmin.f32 %v233, 0.0
    %v310 = vmin.f32 %v238, 0.0
    %v311 = vmin.f32 %v241, 0.0
    %v312 = vmin.f32 %v246, 0.0
    %v313 = vmin.f32 %v249, 0.0
    %v314 = vmin.f32 %v254, 0.0
    %v315 = vmin.f32 %v257, 0.0
    %v316 = vmin.f32 %v262, 0.0
    %v317 = vmin.f32 %v265, 0.0
    %v318 = vmin.f32 %v270, 0.0
    %v319 = vmin.f32 %v273, 0.0
    %v320 = vmin.f32 %v278, 0.0
    %v321 = vmin.f32 %v281, 0.0
    %v322 = vmin.f32 %v286, 0.0
    %v323 = vmin.f32 %v289, 0.0
    %v324 = vmul.f32 %v308, 1.442695
    %v325 = vpow.pop %v324
    %v326 = vmul.f32 %v309, 1.442695
    %v327 = vpow.pop %v326
    %v328 = vmul.f32 %v310, 1.442695
    %v329 = vpow.pop %v328
    %v330 = vmul.f32 %v311, 1.442695
    %v331 = vpow.pop %v330
    %v332 = vmul.f32 %v312, 1.442695
    %v333 = vpow.pop %v332
    %v334 = vmul.f32 %v313, 1.442695
    %v335 = vpow.pop %v334
    %v336 = vmul.f32 %v314, 1.442695
    %v337 = vpow.pop %v336
    %v338 = vmul.f32 %v315, 1.442695
    %v339 = vpow.pop %v338
    %v340 = vmul.f32 %v316, 1.442695
    %v341 = vpow.pop %v340
    %v342 = vmul.f32 %v317, 1.442695
    %v343 = vpow.pop %v342
    %v344 = vmul.f32 %v318, 1.442695
    %v345 = vpow.pop %v344
    %v346 = vmul.f32 %v319, 1.442695
    %v347 = vpow.pop %v346
    %v348 = vmul.f32 %v320, 1.442695
    %v349 = vpow.pop %v348
    %v350 = vmul.f32 %v321, 1.442695
    %v351 = vpow.pop %v350
    %v352 = vmul.f32 %v322, 1.442695
    %v353 = vpow.pop %v352
    %v354 = vmul.f32 %v323, 1.442695
    %v355 = vpow.pop %v354
    %v356 = vsub.f32 %v325, 1.0
    %v357 = vsub.f32 %v327, 1.0
    %v358 = vsub.f32 %v329, 1.0
    %v359 = vsub.f32 %v331, 1.0
    %v360 = vsub.f32 %v333, 1.0
    %v361 = vsub.f32 %v335, 1.0
    %v362 = vsub.f32 %v337, 1.0
    %v363 = vsub.f32 %v339, 1.0
    %v364 = vsub.f32 %v341, 1.0
    %v365 = vsub.f32 %v343, 1.0
    %v366 = vsub.f32 %v345, 1.0
    %v367 = vsub.f32 %v347, 1.0
    %v368 = vsub.f32 %v349, 1.0
    %v369 = vsub.f32 %v351, 1.0
    %v370 = vsub.f32 %v353, 1.0
    %v371 = vsub.f32 %v355, 1.0
    %v372 = vsel %vm292, %v230, %v356
    %v373 = vsel %vm293, %v233, %v357
    %v374 = vsel %vm294, %v238, %v358
    %v375 = vsel %vm295, %v241, %v359
    %v376 = vsel %vm296, %v246, %v360
    %v377 = vsel %vm297, %v249, %v361
    %v378 = vsel %vm298, %v254, %v362
    %v379 = vsel %vm299, %v257, %v363
    %v380 = vsel %vm300, %v262, %v364
    %v381 = vsel %vm301, %v265, %v365
    %v382 = vsel %vm302, %v270, %v366
    %v383 = vsel %vm303, %v273, %v367
    %v384 = vsel %vm304, %v278, %v368
    %v385 = vsel %vm305, %v281, %v369
    %v386 = vsel %vm306, %v286, %v370
    %v387 = vsel %vm307, %v289, %v371
    %v388 = vpack.c.bf16 %v373, %v372
    %v389 = vpack.c.bf16 %v375, %v374
    %v390 = vpack.c.bf16 %v377, %v376
    %v391 = vpack.c.bf16 %v379, %v378
    %v392 = vpack.c.bf16 %v381, %v380
    %v393 = vpack.c.bf16 %v383, %v382
    %v394 = vpack.c.bf16 %v385, %v384
    %v395 = vpack.c.bf16 %v387, %v386
    %v396 = vld [vmem:[#allocation7] sm:$0xf]
    %v397 = vld [vmem:[#allocation7 + $0x4] sm:$0xf]
    %v398 = vld [vmem:[#allocation7 + $0x8] sm:$0xf]
    %v399 = vld [vmem:[#allocation7 + $0xc] sm:$0xf]
    %v400 = vld [vmem:[#allocation7 + $0x10] sm:$0xf]
    %v401 = vld [vmem:[#allocation7 + $0x14] sm:$0xf]
    %v402 = vld [vmem:[#allocation7 + $0x18] sm:$0xf]
    %v403 = vld [vmem:[#allocation7 + $0x1c] sm:$0xf]
    %v404 = vld [vmem:[#allocation7 + $0x20] sm:$0xf]
    %v405 = vld [vmem:[#allocation7 + $0x24] sm:$0xf]
    %v406 = vld [vmem:[#allocation7 + $0x28] sm:$0xf]
    %v407 = vld [vmem:[#allocation7 + $0x2c] sm:$0xf]
    %v408 = vld [vmem:[#allocation7 + $0x30] sm:$0xf]
    %v409 = vld [vmem:[#allocation7 + $0x34] sm:$0xf]
    %v410 = vld [vmem:[#allocation7 + $0x38] sm:$0xf]
    %v411 = vld [vmem:[#allocation7 + $0x3c] sm:$0xf]
    %v428 = vunpack.c.l.b16 %v396
    %v429 = vunpack.c.l.b16 %v397
    %v430 = vunpack.c.l.b16 %v398
    %v431 = vunpack.c.l.b16 %v399
    %v432 = vunpack.c.l.b16 %v400
    %v433 = vunpack.c.l.b16 %v401
    %v434 = vunpack.c.l.b16 %v402
    %v435 = vunpack.c.l.b16 %v403
    %v436 = vunpack.c.l.b16 %v404
    %v437 = vunpack.c.l.b16 %v405
    %v438 = vunpack.c.l.b16 %v406
    %v439 = vunpack.c.l.b16 %v407
    %v440 = vunpack.c.l.b16 %v408
    %v441 = vunpack.c.l.b16 %v409
    %v442 = vunpack.c.l.b16 %v410
    %v443 = vunpack.c.l.b16 %v411
    %v444 = vpack.c.b16 %v429, %v428
    %v445 = vpack.c.b16 %v431, %v430
    %v446 = vpack.c.b16 %v433, %v432
    %v447 = vpack.c.b16 %v435, %v434
    %v448 = vpack.c.b16 %v437, %v436
    %v449 = vpack.c.b16 %v439, %v438
    %v450 = vpack.c.b16 %v441, %v440
    %v451 = vpack.c.b16 %v443, %v442
    %460 = vmatprep.subr.bf16.mxu0 0
    %461 = vmatpush1.bf16.msra.mxu0 %v444
    %462 = vmatprep.subr.bf16.mxu0 0
    %463 = vmatpush1.bf16.msra.mxu0 %v445
    %464 = vmatprep.subr.bf16.mxu0 0
    %465 = vmatpush1.bf16.msra.mxu0 %v446
    %466 = vmatprep.subr.bf16.mxu0 0
    %467 = vmatpush1.bf16.msra.mxu0 %v447
    %468 = vmatprep.subr.bf16.mxu0 0
    %469 = vmatpush1.bf16.msra.mxu0 %v448
    %470 = vmatprep.subr.bf16.mxu0 0
    %471 = vmatpush1.bf16.msra.mxu0 %v449
    %472 = vmatprep.subr.bf16.mxu0 0
    %473 = vmatpush1.bf16.msra.mxu0 %v450
    %474 = vmatprep.subr.bf16.mxu0 0
    %475 = vmatpush1.bf16.msra.mxu0 %v451
    %476 = vmatprep.subr.bf16.mxu0 0
    %477 = vmatpush1.bf16.msra.mxu0 0
    %478 = vmatprep.subr.bf16.mxu0 0
    %479 = vmatpush1.bf16.msra.mxu0 0
    %480 = vmatprep.subr.bf16.mxu0 0
    %481 = vmatpush1.bf16.msra.mxu0 0
    %482 = vmatprep.subr.bf16.mxu0 0
    %483 = vmatpush1.bf16.msra.mxu0 0
    %484 = vmatprep.subr.bf16.mxu0 0
    %485 = vmatpush1.bf16.msra.mxu0 0
    %486 = vmatprep.subr.bf16.mxu0 0
    %487 = vmatpush1.bf16.msra.mxu0 0
    %488 = vmatprep.subr.bf16.mxu0 0
    %489 = vmatpush1.bf16.msra.mxu0 0
    %490 = vmatprep.subr.bf16.mxu0 0
    %491 = vmatpush1.bf16.msra.mxu0 0
    %492 = vmatprep.mubr.bf16.mxu0 0
    %493 = vmatmul.mubr.bf16.gmra.mrb[0].mxu0 %v388
    %v494 = vpop.f32.mrb[0].mxu0
    %v495 = vadd.f32 0.0, %v494
    %v496 = vpop.f32.mrb[0].mxu0
    %v497 = vpop.f32.mrb[0].mxu0
    %v498 = vadd.f32 0.0, %v497
    %v499 = vpop.f32.mrb[0].mxu0
    %500 = vmatprep.mubr.bf16.mxu0 0
    %501 = vmatmul.mubr.bf16.gmra.mrb[0].mxu0 %v389
    %v502 = vpop.f32.mrb[0].mxu0
    %v503 = vadd.f32 0.0, %v502
    %v504 = vpop.f32.mrb[0].mxu0
    %v505 = vpop.f32.mrb[0].mxu0
    %v506 = vadd.f32 0.0, %v505
    %v507 = vpop.f32.mrb[0].mxu0
    %508 = vmatprep.mubr.bf16.mxu0 0
    %509 = vmatmul.mubr.bf16.gmra.mrb[0].mxu0 %v390
    %v510 = vpop.f32.mrb[0].mxu0
    %v511 = vadd.f32 0.0, %v510
    %v512 = vpop.f32.mrb[0].mxu0
    %v513 = vpop.f32.mrb[0].mxu0
    %v514 = vadd.f32 0.0, %v513
    %v515 = vpop.f32.mrb[0].mxu0
    %516 = vmatprep.mubr.bf16.mxu0 0
    %517 = vmatmul.mubr.bf16.gmra.mrb[0].mxu0 %v391
    %v518 = vpop.f32.mrb[0].mxu0
    %v519 = vadd.f32 0.0, %v518
    %v520 = vpop.f32.mrb[0].mxu0
    %v521 = vpop.f32.mrb[0].mxu0
    %v522 = vadd.f32 0.0, %v521
    %v523 = vpop.f32.mrb[0].mxu0
    %524 = vmatprep.mubr.bf16.mxu0 0
    %525 = vmatmul.mubr.bf16.gmra.mrb[0].mxu0 %v392
    %v526 = vpop.f32.mrb[0].mxu0
    %v527 = vadd.f32 0.0, %v526
    %v528 = vpop.f32.mrb[0].mxu0
    %v529 = vpop.f32.mrb[0].mxu0
    %v530 = vadd.f32 0.0, %v529
    %v531 = vpop.f32.mrb[0].mxu0
    %532 = vmatprep.mubr.bf16.mxu0 0
    %533 = vmatmul.mubr.bf16.gmra.mrb[0].mxu0 %v393
    %v534 = vpop.f32.mrb[0].mxu0
    %v535 = vadd.f32 0.0, %v534
    %v536 = vpop.f32.mrb[0].mxu0
    %v537 = vpop.f32.mrb[0].mxu0
    %v538 = vadd.f32 0.0, %v537
    %v539 = vpop.f32.mrb[0].mxu0
    %540 = vmatprep.mubr.bf16.mxu0 0
    %541 = vmatmul.mubr.bf16.gmra.mrb[0].mxu0 %v394
    %v542 = vpop.f32.mrb[0].mxu0
    %v543 = vadd.f32 0.0, %v542
    %v544 = vpop.f32.mrb[0].mxu0
    %v545 = vpop.f32.mrb[0].mxu0
    %v546 = vadd.f32 0.0, %v545
    %v547 = vpop.f32.mrb[0].mxu0
    %548 = vmatprep.mubr.bf16.mxu0 0
    %549 = vmatmul.mubr.bf16.gmra.mrb[0].mxu0 %v395
    %v550 = vpop.f32.mrb[0].mxu0
    %v551 = vadd.f32 0.0, %v550
    %v552 = vpop.f32.mrb[0].mxu0
    %v553 = vpop.f32.mrb[0].mxu0
    %v554 = vadd.f32 0.0, %v553
    %v555 = vpop.f32.mrb[0].mxu0
    %556 = vdwg.mxu0
    %v557 = vpack.c.bf16 %v498, %v495
    %v558 = vpack.c.bf16 %v506, %v503
    %v559 = vpack.c.bf16 %v514, %v511
    %v560 = vpack.c.bf16 %v522, %v519
    %v561 = vpack.c.bf16 %v530, %v527
    %v562 = vpack.c.bf16 %v538, %v535
    %v563 = vpack.c.bf16 %v546, %v543
    %v564 = vpack.c.bf16 %v554, %v551
    %v573 = vunpack.c.l.b16 %v557
    %v574 = vunpack.c.h.b16 %v557
    %v575 = vunpack.c.l.b16 %v558
    %v576 = vunpack.c.h.b16 %v558
    %v577 = vunpack.c.l.b16 %v559
    %v578 = vunpack.c.h.b16 %v559
    %v579 = vunpack.c.l.b16 %v560
    %v580 = vunpack.c.h.b16 %v560
    %v581 = vunpack.c.l.b16 %v561
    %v582 = vunpack.c.h.b16 %v561
    %v583 = vunpack.c.l.b16 %v562
    %v584 = vunpack.c.h.b16 %v562
    %v585 = vunpack.c.l.b16 %v563
    %v586 = vunpack.c.h.b16 %v563
    %v587 = vunpack.c.l.b16 %v564
    %v588 = vunpack.c.h.b16 %v564
    %v589 = vpack.c.b16 %v573, %v573
    %v590 = vpack.c.b16 %v574, %v574
    %v591 = vpack.c.b16 %v575, %v575
    %v592 = vpack.c.b16 %v576, %v576
    %v593 = vpack.c.b16 %v577, %v577
    %v594 = vpack.c.b16 %v578, %v578
    %v595 = vpack.c.b16 %v579, %v579
    %v596 = vpack.c.b16 %v580, %v580
    %v597 = vpack.c.b16 %v581, %v581
    %v598 = vpack.c.b16 %v582, %v582
    %v599 = vpack.c.b16 %v583, %v583
    %v600 = vpack.c.b16 %v584, %v584
    %v601 = vpack.c.b16 %v585, %v585
    %v602 = vpack.c.b16 %v586, %v586
    %v603 = vpack.c.b16 %v587, %v587
    %v604 = vpack.c.b16 %v588, %v588
    %621 = vst [vmem:[#allocation8] sm:$0xf] %v589
    %622 = vst [vmem:[#allocation8 + $0x4] sm:$0xf] %v590
    %623 = vst [vmem:[#allocation8 + $0x8] sm:$0xf] %v591
    %624 = vst [vmem:[#allocation8 + $0xc] sm:$0xf] %v592
    %625 = vst [vmem:[#allocation8 + $0x10] sm:$0xf] %v593
    %626 = vst [vmem:[#allocation8 + $0x14] sm:$0xf] %v594
    %627 = vst [vmem:[#allocation8 + $0x18] sm:$0xf] %v595
    %628 = vst [vmem:[#allocation8 + $0x1c] sm:$0xf] %v596
    %629 = vst [vmem:[#allocation8 + $0x20] sm:$0xf] %v597
    %630 = vst [vmem:[#allocation8 + $0x24] sm:$0xf] %v598
    %631 = vst [vmem:[#allocation8 + $0x28] sm:$0xf] %v599
    %632 = vst [vmem:[#allocation8 + $0x2c] sm:$0xf] %v600
    %633 = vst [vmem:[#allocation8 + $0x30] sm:$0xf] %v601
    %634 = vst [vmem:[#allocation8 + $0x34] sm:$0xf] %v602
    %635 = vst [vmem:[#allocation8 + $0x38] sm:$0xf] %v603
    %636 = vst [vmem:[#allocation8 + $0x3c] sm:$0xf] %v604
    // Predicated region
    $region30: #{tpu_custom_call.1} parent=1 // pred_check
      _
    $region31: #{tpu_custom_call.1} parent=1 // pred_check_branch
      %638 = sbr.rel (0) target = $region33
    $region32: #{tpu_custom_call.1} parent=1 // pred_region
      %s640 = ssub.s32 1024, 1024
      %641 = vsyncadd [#allocation4], %s640
      %s642 = sshll.u32 [#allocation8], 4
      %s643 = int_to_ptr.vmem [resolvable:$true] %s642
      %648 = dma.vmem_to_hbm [thread:$0]  %s643, 1024, %s4, [#allocation4], 64, 64, 4
    $region33: #{tpu_custom_call.1} parent=1 // pred_fallthru
      _
    // Predicated region
    $region34: #{tpu_custom_call.1} parent=1 // pred_check
      _
    $region35: #{tpu_custom_call.1} parent=1 // pred_check_branch
      %650 = sbr.rel (0) target = $region37
    $region36: #{tpu_custom_call.1} parent=1 // pred_region
      %651 = dma.done [#allocation4], 1024
    $region37: #{tpu_custom_call.1} parent=1 // pred_fallthru
      _
    %652 = vsyncpa [#allocation3], 1
    %653 = vsyncpa [#allocation6], 1
    %654 = vsyncpa [#allocation4], 1

</llo_original>
